<compile_context>
chip_gen: v5e
topology: v5e:2x2
jax: 0.10.0
libtpu: 0.0.40
codegen_flags: <defaults>
</compile_context>

<pallas_src>
import jax
import jax.numpy as jnp
from jax.experimental import pallas as pl
from jax.experimental.pallas import tpu as pltpu

_VMEM_LIMIT = 32 * 1024 * 1024  # explicit, portable to v7x's 64 MiB VMEM


def _round_up(x, m):
    return (x + m - 1) // m * m


# ----------------------------------------------------------------------------
# Segmentation (nnU-Net style) statistics kernel.
# Layout: logits (N, C, HW_pad) — classes on sublanes, pixels on lanes;
#         labels (N, 1, HW_pad) int32 with -1 marking padded pixels.
# Grid = (batch, hw_slice, hw_step); the last axis is the reduction, partial
# per-(batch, slice) stats go to a (rows, 128) output block:
#   column 0: per-class intersection  sum_i [y_i==c] * p_ic
#   column 1: per-class prob sum      sum_i p_ic           (valid pixels only)
#   column 2: per-class target sum    sum_i [y_i==c]
#   column 3: per-class CE numerator  sum_i [y_i==c] * nll_i
# ----------------------------------------------------------------------------
def _seg_stats_kernel(logits_ref, labels_ref, out_ref, acc_ref):
    step = pl.program_id(2)

    @pl.when(step == 0)
    def _():
        acc_ref[...] = jnp.zeros_like(acc_ref)

    logits = logits_ref[0].astype(jnp.float32)      # (C, TP)
    labels = labels_ref[0]                          # (1, TP) int32, -1 = pad
    C, TP = logits.shape

    # softmax over the class (sublane) axis; pixels fill all 128 lanes
    m = jnp.max(logits, axis=0, keepdims=True)      # (1, TP)
    z = logits - m
    e = jnp.exp(z)
    s = jnp.sum(e, axis=0, keepdims=True)           # (1, TP)
    inv_s = 1.0 / s
    probs = e * inv_s                               # (C, TP)

    cls = jax.lax.broadcasted_iota(jnp.int32, (C, TP), 0)
    onehot = (cls == labels).astype(jnp.float32)    # (C, TP); all-zero for pad
    valid = (labels >= 0).astype(jnp.float32)       # (1, TP)

    # nll = logsumexp - logit_true = log(s) - (logit_true - m)
    z_true = jnp.sum(onehot * z, axis=0, keepdims=True)       # (1, TP)
    nll = jnp.log(s) - z_true                                  # (1, TP)

    inter = jnp.sum(onehot * probs, axis=1, keepdims=True)     # (C, 1)
    psum = jnp.sum(probs * valid, axis=1, keepdims=True)       # (C, 1)
    tsum = jnp.sum(onehot, axis=1, keepdims=True)              # (C, 1)
    ce_num = jnp.sum(onehot * nll, axis=1, keepdims=True)      # (C, 1)

    acc_ref[0:C, 0:1] += inter
    acc_ref[0:C, 1:2] += psum
    acc_ref[0:C, 2:3] += tsum
    acc_ref[0:C, 3:4] += ce_num

    @pl.when(step == pl.num_programs(2) - 1)
    def _():
        out_ref[0, 0] = acc_ref[...]                # lane-dense full-block store


def seg_stats_pallas(logits, labels, *, tile_hw, num_slices):
    """logits: (N, C, HW_pad) f32; labels: (N, 1, HW_pad) int32 (-1 = pad)."""
    N, C, hw_pad = logits.shape
    steps = hw_pad // (num_slices * tile_hw)
    assert num_slices * steps * tile_hw == hw_pad
    rows = _round_up(C, 8)

    out = pl.pallas_call(
        _seg_stats_kernel,
        out_shape=jax.ShapeDtypeStruct((N, num_slices, rows, 128), jnp.float32),
        grid_spec=pltpu.PrefetchScalarGridSpec(
            num_scalar_prefetch=0,
            grid=(N, num_slices, steps),
            in_specs=[
                pl.BlockSpec((1, C, tile_hw),
                             lambda n, s, i: (n, 0, s * steps + i)),
                pl.BlockSpec((1, 1, tile_hw),
                             lambda n, s, i: (n, 0, s * steps + i)),
            ],
            out_specs=pl.BlockSpec((1, 1, rows, 128),
                                   lambda n, s, i: (n, s, 0, 0)),
            scratch_shapes=[pltpu.VMEM((rows, 128), jnp.float32)],
        ),
        compiler_params=pltpu.CompilerParams(
            dimension_semantics=("parallel", "parallel", "arbitrary"),
            vmem_limit_bytes=_VMEM_LIMIT),
    )(logits, labels)
    return jnp.sum(out, axis=(0, 1))   # (rows, 128) summed partials


def nnu_seg_loss(pred_seg_nchw, targ_labels, class_weights,
                 *, tile_hw=8192, num_slices=2):
    """nnU-Net style: weighted cross-entropy + soft Dice.

    pred_seg_nchw: (N, C, H, W) float logits (PyTorch NCHW convention)
    targ_labels:   (N, H, W) int class labels
    """
    N, C, H, W = pred_seg_nchw.shape
    hw = H * W

    per_slice = -(-hw // num_slices)
    tile = min(tile_hw, _round_up(max(per_slice, 128), 128))
    steps = -(-hw // (num_slices * tile))
    hw_pad = num_slices * steps * tile

    logits = pred_seg_nchw.reshape(N, C, hw).astype(jnp.float32)
    labels = targ_labels.reshape(N, 1, hw).astype(jnp.int32)
    if hw_pad != hw:
        logits = jnp.pad(logits, ((0, 0), (0, 0), (0, hw_pad - hw)))
        labels = jnp.pad(labels, ((0, 0), (0, 0), (0, hw_pad - hw)),
                         constant_values=-1)      # padded pixels fully masked

    stats = seg_stats_pallas(logits, labels, tile_hw=tile, num_slices=num_slices)
    inter = stats[0:C, 0]
    psum = stats[0:C, 1]
    tsum = stats[0:C, 2]
    ce_num = stats[0:C, 3]

    w = class_weights.reshape(C).astype(jnp.float32)
    eps = 1e-5
    ce = jnp.sum(w * ce_num) / jnp.sum(w * tsum)
    dice_per_class = (2.0 * inter + eps) / (psum + tsum + eps)
    dice_loss = 1.0 - jnp.mean(dice_per_class)
    return ce + dice_loss


# ----------------------------------------------------------------------------
# Batched Chamfer distance kernel: one pallas_call, grid over mesh index
# (marked "parallel" so v7x runs pairs on both TensorCores).  Point clouds are
# zero-padded to a common size; padded rows/cols are masked with a large
# sentinel before the mins and excluded from the means via the true counts
# passed through scalar prefetch.
# Pairwise squared distances via ||p||^2 + ||q||^2 - 2 p.q^T (MXU matmul);
# the target cloud is fed pre-transposed (3, NQ) so no in-kernel transpose.
# TODO(synk): for clouds too large for the (NP, NQ) matrix in VMEM, tile over
#             NQ with a running per-row min accumulator.
# ----------------------------------------------------------------------------
def _chamfer_kernel(np_ref, nq_ref, p_ref, qt_ref, out_ref):
    m_idx = pl.program_id(0)
    n_p = np_ref[m_idx]                               # true pred point count
    n_q = nq_ref[m_idx]                               # true targ point count

    p = p_ref[0].astype(jnp.float32)                  # (NP, 3)
    qt = qt_ref[0].astype(jnp.float32)                # (3, NQ)
    NP = p.shape[0]
    NQ = qt.shape[1]

    p2 = jnp.sum(p * p, axis=-1, keepdims=True)       # (NP, 1)
    q2 = jnp.sum(qt * qt, axis=0, keepdims=True)      # (1, NQ)
    d = p2 + q2 - 2.0 * jnp.dot(p, qt, preferred_element_type=jnp.float32)
    d = jnp.maximum(d, 0.0)                           # (NP, NQ)

    col_valid = jax.lax.broadcasted_iota(jnp.int32, (NP, NQ), 1) < n_q
    row_valid = jax.lax.broadcasted_iota(jnp.int32, (NP, NQ), 0) < n_p

    row_min = jnp.min(jnp.where(col_valid, d, 1e30), axis=1, keepdims=True)
    col_min = jnp.min(jnp.where(row_valid, d, 1e30), axis=0, keepdims=True)

    row_mask = jax.lax.broadcasted_iota(jnp.int32, (NP, 1), 0) < n_p
    col_mask = jax.lax.broadcasted_iota(jnp.int32, (1, NQ), 1) < n_q

    cham = (jnp.sum(jnp.where(row_mask, row_min, 0.0)) / n_p.astype(jnp.float32)
            + jnp.sum(jnp.where(col_mask, col_min, 0.0)) / n_q.astype(jnp.float32))
    out_ref[...] = jnp.broadcast_to(cham, (1, 1, 128))   # lane-dense store


def chamfer_batch_pallas(pred_meshes, targ_meshes):
    """Lists of (Ni, 3) point clouds -> (M,) per-pair chamfer distances."""
    M = len(pred_meshes)
    NP = _round_up(max(p.shape[0] for p in pred_meshes), 8)
    NQ = _round_up(max(t.shape[0] for t in targ_meshes), 128)

    def pad_rows(x, n):
        return jnp.pad(x.astype(jnp.float32), ((0, n - x.shape[0]), (0, 0)))

    pred = jnp.stack([pad_rows(p, NP) for p in pred_meshes])        # (M, NP, 3)
    targ_t = jnp.stack([pad_rows(t, NQ).T for t in targ_meshes])    # (M, 3, NQ)
    np_cnt = jnp.asarray([p.shape[0] for p in pred_meshes], jnp.int32)
    nq_cnt = jnp.asarray([t.shape[0] for t in targ_meshes], jnp.int32)

    out = pl.pallas_call(
        _chamfer_kernel,
        out_shape=jax.ShapeDtypeStruct((M, 1, 128), jnp.float32),
        grid_spec=pltpu.PrefetchScalarGridSpec(
            num_scalar_prefetch=2,
            grid=(M,),
            in_specs=[
                pl.BlockSpec((1, NP, 3), lambda m, n_p, n_q: (m, 0, 0)),
                pl.BlockSpec((1, 3, NQ), lambda m, n_p, n_q: (m, 0, 0)),
            ],
            out_specs=pl.BlockSpec((1, 1, 128), lambda m, n_p, n_q: (m, 0, 0)),
        ),
        compiler_params=pltpu.CompilerParams(
            dimension_semantics=("parallel",),
            vmem_limit_bytes=_VMEM_LIMIT),
    )(np_cnt, nq_cnt, pred, targ_t)
    return out[:, 0, 0]


# ----------------------------------------------------------------------------
# DPSRLoss forward.
# ----------------------------------------------------------------------------
class DPSRLossPallas:
    DEFAULT_W_SEG = 0.5
    DEFAULT_W_CHAMFER = 0.5
    DEFAULT_EPOCH_START_CHAMFER = 0.1

    def __init__(self, class_weights,
                 w_seg=DEFAULT_W_SEG,
                 w_mesh=DEFAULT_W_CHAMFER,
                 epoch_start_mesh_loss=DEFAULT_EPOCH_START_CHAMFER):
        self.class_weights = jnp.asarray(class_weights, jnp.float32)
        self.w_seg = float(w_seg)
        self.w_mesh = float(w_mesh)
        self.epoch_start_mesh = float(epoch_start_mesh_loss)

    def __call__(self, prediction, target, current_epoch_fraction=None):
        pred_seg, pred_meshes = prediction
        targ_seg, targ_meshes = target

        seg_loss = nnu_seg_loss(pred_seg, targ_seg, self.class_weights)

        if (current_epoch_fraction is not None
                and current_epoch_fraction >= self.epoch_start_mesh
                and len(pred_meshes) == len(targ_meshes)
                and self.w_mesh > 0):
            chams = chamfer_batch_pallas(pred_meshes, targ_meshes)
            cham_loss = jnp.mean(chams)
            loss = self.w_seg * seg_loss + self.w_mesh * cham_loss
        else:
            cham_loss = jnp.asarray(0.0, jnp.float32)
            loss = seg_loss

        return loss, {"Segmentation": seg_loss, "Chamfer": cham_loss}


if __name__ == "__main__":
    key = jax.random.PRNGKey(0)
    k1, k2, k3, k4, k5, k6 = jax.random.split(key, 6)

    # segmentation: batch=2, classes=4, spatial=16x16  (NCHW like PyTorch)
    N, C, H, W = 2, 4, 16, 16
    pred_seg = jax.random.normal(k1, (N, C, H, W), dtype=jnp.float32)
    targ_seg = jax.random.randint(k2, (N, H, W), 0, C, dtype=jnp.int32)

    # two mesh pairs, represented as point clouds (points, 3)
    pred_meshes = [jax.random.normal(k3, (128, 3), dtype=jnp.float32),
                   jax.random.normal(k4, (128, 3), dtype=jnp.float32)]
    targ_meshes = [jax.random.normal(k5, (96, 3), dtype=jnp.float32) * 0.9,
                   jax.random.normal(k6, (96, 3), dtype=jnp.float32) * 1.1]

    # deterministic class weights (module __init__ arg)
    class_weights = jnp.array([0.25, 0.5, 1.0, 2.0], dtype=jnp.float32)

    loss_fn = DPSRLossPallas(class_weights)
    loss, parts = loss_fn((pred_seg, pred_meshes),
                          (targ_seg, targ_meshes),
                          current_epoch_fraction=0.5)

    jax.block_until_ready(loss)
    jax.block_until_ready(parts["Segmentation"])
    jax.block_until_ready(parts["Chamfer"])

    print("KERNEL_OK")
</pallas_src>

<mosaic_0001>
module attributes {stable_mosaic.version = 11 : i64} {
  func.func @_seg_stats_kernel(%arg0: i32, %arg1: i32, %arg2: i32, %arg3: memref<1x4x128xf32, #tpu.memory_space<vmem>>, %arg4: memref<1x1x128xi32, #tpu.memory_space<vmem>>, %arg5: memref<1x1x8x128xf32, #tpu.memory_space<vmem>>, %arg6: memref<8x128xf32, #tpu.memory_space<vmem>>) attributes {dimension_semantics = [#tpu.dimension_semantics<parallel>, #tpu.dimension_semantics<parallel>, #tpu.dimension_semantics<arbitrary>], iteration_bounds = array<i64: 2, 2, 1>, scalar_prefetch = 0 : i64, scratch_operands = 1 : i64, tpu.core_type = #tpu.core_type<tc>, window_params = [{transform_indices = @transform_0, window_bounds = array<i64: 1, 4, 128>}, {transform_indices = @transform_1, window_bounds = array<i64: 1, 1, 128>}, {transform_indices = @transform_2, window_bounds = array<i64: 1, 1, 8, 128>}]} {
    %c0_i32 = arith.constant 0 : i32
    %0 = arith.cmpi eq, %arg2, %c0_i32 : i32
    %1 = arith.extui %0 : i1 to i32
    %c0_i32_0 = arith.constant 0 : i32
    %2 = arith.cmpi ne, %1, %c0_i32_0 : i32
    scf.if %2 {
      %cst_29 = arith.constant 0.000000e+00 : f32
      %60 = vector.broadcast %cst_29 : f32 to vector<8x128xf32>
      %c0_30 = arith.constant 0 : index
      %c0_31 = arith.constant 0 : index
      %61 = vector.load %arg6[%c0_30, %c0_31] : memref<8x128xf32, #tpu.memory_space<vmem>>, vector<8x128xf32>
      tpu.vector_store %arg6[%c0_30, %c0_31], %60 {strides = array<i32>} : memref<8x128xf32, #tpu.memory_space<vmem>>, vector<8x128xf32>,
    } else {
    }
    %c0 = arith.constant 0 : index
    %c0_1 = arith.constant 0 : index
    %c0_2 = arith.constant 0 : index
    %3 = vector.load %arg3[%c0, %c0_1, %c0_2] : memref<1x4x128xf32, #tpu.memory_space<vmem>>, vector<1x4x128xf32>
    %4 = vector.shape_cast %3 : vector<1x4x128xf32> to vector<4x128xf32>
    %c0_3 = arith.constant 0 : index
    %c0_4 = arith.constant 0 : index
    %c0_5 = arith.constant 0 : index
    %5 = vector.load %arg4[%c0_3, %c0_4, %c0_5] : memref<1x1x128xi32, #tpu.memory_space<vmem>>, vector<1x1x128xi32>
    %6 = vector.shape_cast %5 : vector<1x1x128xi32> to vector<1x128xi32>
    %cst = arith.constant dense<0xFF800000> : vector<128xf32>
    %7 = vector.multi_reduction <maximumf>, %4, %cst [0] : vector<4x128xf32> to vector<128xf32>
    %8 = vector.shape_cast %7 : vector<128xf32> to vector<1x128xf32>
    %9 = vector.broadcast %8 : vector<1x128xf32> to vector<4x128xf32>
    %10 = arith.subf %4, %9 : vector<4x128xf32>
    %11 = math.exp %10 : vector<4x128xf32>
    %cst_6 = arith.constant dense<0.000000e+00> : vector<128xf32>
    %12 = vector.multi_reduction <add>, %11, %cst_6 [0] : vector<4x128xf32> to vector<128xf32>
    %13 = vector.shape_cast %12 : vector<128xf32> to vector<1x128xf32>
    %cst_7 = arith.constant 1.000000e+00 : f32
    %14 = vector.broadcast %cst_7 : f32 to vector<1x128xf32>
    %15 = arith.divf %14, %13 : vector<1x128xf32>
    %16 = vector.broadcast %15 : vector<1x128xf32> to vector<4x128xf32>
    %17 = arith.mulf %11, %16 : vector<4x128xf32>
    %18 = tpu.iota {dimensions = array<i32: 0>} : vector<4x128xi32>
    %19 = vector.broadcast %6 : vector<1x128xi32> to vector<4x128xi32>
    %20 = arith.cmpi eq, %18, %19 : vector<4x128xi32>
    %21 = arith.extui %20 : vector<4x128xi1> to vector<4x128xi32>
    %22 = arith.sitofp %21 : vector<4x128xi32> to vector<4x128xf32>
    %c0_i32_8 = arith.constant 0 : i32
    %23 = vector.broadcast %c0_i32_8 : i32 to vector<1x128xi32>
    %24 = arith.cmpi sge, %6, %23 : vector<1x128xi32>
    %25 = arith.extui %24 : vector<1x128xi1> to vector<1x128xi32>
    %26 = arith.sitofp %25 : vector<1x128xi32> to vector<1x128xf32>
    %27 = arith.mulf %22, %10 : vector<4x128xf32>
    %cst_9 = arith.constant dense<0.000000e+00> : vector<128xf32>
    %28 = vector.multi_reduction <add>, %27, %cst_9 [0] : vector<4x128xf32> to vector<128xf32>
    %29 = vector.shape_cast %28 : vector<128xf32> to vector<1x128xf32>
    %30 = math.log %13 : vector<1x128xf32>
    %31 = arith.subf %30, %29 : vector<1x128xf32>
    %32 = arith.mulf %22, %17 : vector<4x128xf32>
    %cst_10 = arith.constant dense<0.000000e+00> : vector<4xf32>
    %33 = vector.multi_reduction <add>, %32, %cst_10 [1] : vector<4x128xf32> to vector<4xf32>
    %34 = vector.shape_cast %33 : vector<4xf32> to vector<4x1xf32>
    %35 = vector.broadcast %26 : vector<1x128xf32> to vector<4x128xf32>
    %36 = arith.mulf %17, %35 : vector<4x128xf32>
    %cst_11 = arith.constant dense<0.000000e+00> : vector<4xf32>
    %37 = vector.multi_reduction <add>, %36, %cst_11 [1] : vector<4x128xf32> to vector<4xf32>
    %38 = vector.shape_cast %37 : vector<4xf32> to vector<4x1xf32>
    %cst_12 = arith.constant dense<0.000000e+00> : vector<4xf32>
    %39 = vector.multi_reduction <add>, %22, %cst_12 [1] : vector<4x128xf32> to vector<4xf32>
    %40 = vector.shape_cast %39 : vector<4xf32> to vector<4x1xf32>
    %41 = vector.broadcast %31 : vector<1x128xf32> to vector<4x128xf32>
    %42 = arith.mulf %22, %41 : vector<4x128xf32>
    %cst_13 = arith.constant dense<0.000000e+00> : vector<4xf32>
    %43 = vector.multi_reduction <add>, %42, %cst_13 [1] : vector<4x128xf32> to vector<4xf32>
    %44 = vector.shape_cast %43 : vector<4xf32> to vector<4x1xf32>
    %c0_14 = arith.constant 0 : index
    %c0_15 = arith.constant 0 : index
    %45 = vector.load %arg6[%c0_14, %c0_15] : memref<8x128xf32, #tpu.memory_space<vmem>>, vector<4x1xf32>
    %46 = arith.addf %45, %34 : vector<4x1xf32>
    %c0_16 = arith.constant 0 : index
    %c0_17 = arith.constant 0 : index
    %47 = vector.load %arg6[%c0_16, %c0_17] : memref<8x128xf32, #tpu.memory_space<vmem>>, vector<4x1xf32>
    tpu.vector_store %arg6[%c0_16, %c0_17], %46 {strides = array<i32>} : memref<8x128xf32, #tpu.memory_space<vmem>>, vector<4x1xf32>,
    %c0_18 = arith.constant 0 : index
    %c1 = arith.constant 1 : index
    %48 = vector.load %arg6[%c0_18, %c1] : memref<8x128xf32, #tpu.memory_space<vmem>>, vector<4x1xf32>
    %49 = arith.addf %48, %38 : vector<4x1xf32>
    %c0_19 = arith.constant 0 : index
    %c1_20 = arith.constant 1 : index
    %50 = vector.load %arg6[%c0_19, %c1_20] : memref<8x128xf32, #tpu.memory_space<vmem>>, vector<4x1xf32>
    tpu.vector_store %arg6[%c0_19, %c1_20], %49 {strides = array<i32>} : memref<8x128xf32, #tpu.memory_space<vmem>>, vector<4x1xf32>,
    %c0_21 = arith.constant 0 : index
    %c2 = arith.constant 2 : index
    %51 = vector.load %arg6[%c0_21, %c2] : memref<8x128xf32, #tpu.memory_space<vmem>>, vector<4x1xf32>
    %52 = arith.addf %51, %40 : vector<4x1xf32>
    %c0_22 = arith.constant 0 : index
    %c2_23 = arith.constant 2 : index
    %53 = vector.load %arg6[%c0_22, %c2_23] : memref<8x128xf32, #tpu.memory_space<vmem>>, vector<4x1xf32>
    tpu.vector_store %arg6[%c0_22, %c2_23], %52 {strides = array<i32>} : memref<8x128xf32, #tpu.memory_space<vmem>>, vector<4x1xf32>,
    %c0_24 = arith.constant 0 : index
    %c3 = arith.constant 3 : index
    %54 = vector.load %arg6[%c0_24, %c3] : memref<8x128xf32, #tpu.memory_space<vmem>>, vector<4x1xf32>
    %55 = arith.addf %54, %44 : vector<4x1xf32>
    %c0_25 = arith.constant 0 : index
    %c3_26 = arith.constant 3 : index
    %56 = vector.load %arg6[%c0_25, %c3_26] : memref<8x128xf32, #tpu.memory_space<vmem>>, vector<4x1xf32>
    tpu.vector_store %arg6[%c0_25, %c3_26], %55 {strides = array<i32>} : memref<8x128xf32, #tpu.memory_space<vmem>>, vector<4x1xf32>,
    %c0_i32_27 = arith.constant 0 : i32
    %57 = arith.cmpi eq, %arg2, %c0_i32_27 : i32
    %58 = arith.extui %57 : i1 to i32
    %c0_i32_28 = arith.constant 0 : i32
    %59 = arith.cmpi ne, %58, %c0_i32_28 : i32
    scf.if %59 {
      %c0_29 = arith.constant 0 : index
      %c0_30 = arith.constant 0 : index
      %60 = vector.load %arg6[%c0_29, %c0_30] : memref<8x128xf32, #tpu.memory_space<vmem>>, vector<8x128xf32>
      %c0_31 = arith.constant 0 : index
      %c0_32 = arith.constant 0 : index
      %c0_33 = arith.constant 0 : index
      %c0_34 = arith.constant 0 : index
      %61 = vector.load %arg5[%c0_31, %c0_32, %c0_33, %c0_34] : memref<1x1x8x128xf32, #tpu.memory_space<vmem>>, vector<1x1x8x128xf32>
      %62 = vector.shape_cast %61 : vector<1x1x8x128xf32> to vector<8x128xf32>
      %63 = vector.shape_cast %60 : vector<8x128xf32> to vector<1x1x8x128xf32>
      tpu.vector_store %arg5[%c0_31, %c0_32, %c0_33, %c0_34], %63 {strides = array<i32>} : memref<1x1x8x128xf32, #tpu.memory_space<vmem>>, vector<1x1x8x128xf32>,
    } else {
    }
    return
  }
  func.func @transform_0(%arg0: i32, %arg1: i32, %arg2: i32) -> (i32, i32, i32) {
    %c1_i32 = arith.constant 1 : i32
    %0 = arith.muli %arg1, %c1_i32 : i32
    %1 = arith.addi %0, %arg2 : i32
    %c0_i32 = arith.constant 0 : i32
    %c0_i32_0 = arith.constant 0 : i32
    return %arg0, %c0_i32, %1 : i32, i32, i32
  }
  func.func @transform_1(%arg0: i32, %arg1: i32, %arg2: i32) -> (i32, i32, i32) {
    %c1_i32 = arith.constant 1 : i32
    %0 = arith.muli %arg1, %c1_i32 : i32
    %1 = arith.addi %0, %arg2 : i32
    %c0_i32 = arith.constant 0 : i32
    %c0_i32_0 = arith.constant 0 : i32
    return %arg0, %c0_i32, %1 : i32, i32, i32
  }
  func.func @transform_2(%arg0: i32, %arg1: i32, %arg2: i32) -> (i32, i32, i32, i32) {
    %c0_i32 = arith.constant 0 : i32
    %c0_i32_0 = arith.constant 0 : i32
    %c0_i32_1 = arith.constant 0 : i32
    return %arg0, %arg1, %c0_i32, %c0_i32_0 : i32, i32, i32, i32
  }
}

</mosaic_0001>

<llo_original>
// kernel: tpu_custom_call.1
$region0: #{tpu_custom_call.1}
  #allocation0 [shape = 'u32[]', space=smem, size = 0x4, offset = 0x4, fixed_abs, tag = 'smem constant byte address 0x4 - core index']
  #allocation1 [shape = 'u32[72,128]{1,0:T(1,128)}', space=vmem, size = 0x9000, scoped, tag = 'internal scratch']
  #allocation2 [shape = 'f32[8,128]{1,0:T(8,128)}', space=vmem, size = 0x1000, scoped, tag = 'scratch operand']
  %s0 = inlined_call_operand.hbm [shape: f32[2,4,256], index: 0, kind: input, shape index: {}]
  %s1 = inlined_call_operand.hbm [shape: s32[2,1,256], index: 1, kind: input, shape index: {}]
  %s2 = inlined_call_operand.hbm [shape: f32[2,2,8,128], index: 2, kind: output, shape index: {}]
  %s3 = sld [smem:[#allocation0]]
  $region57: #{tpu_custom_call.1} parent=0
    _
  %s5 = ssub.s32 1, %s3
  %s6 = scalar_select 0, %s5, %s3
  $region1: #{tpu_custom_call.1} parent=0
    #allocation3 [shape = 'u8[4096]{0}', space=vmem, size = 0x1000, scoped, tag = 'input window, operand 0']
    #allocation4 [shape = 's32[2]{0}', space=sflag, size = 0x8, scoped, tag = 'scoped memory for tpu_custom_call.1']
    #allocation5 [shape = 's32[2]{0}', space=sflag, size = 0x8, scoped, tag = 'scoped memory for tpu_custom_call.1']
    #allocation6 [shape = 'u8[1024]{0}', space=vmem, size = 0x400, scoped, tag = 'input window, operand 1']
    #allocation7 [shape = 's32[2]{0}', space=sflag, size = 0x8, scoped, tag = 'scoped memory for tpu_custom_call.1']
    #allocation8 [shape = 'u8[8192]{0}', space=vmem, size = 0x2000, scoped, tag = 'output window, operand 0']
    %7 = vsyncpa [#allocation4], 0
    %s8 = scalar_lea.sflag [#allocation4], 1
    %9 = vsyncpa %s8, 0
    %10 = vsyncpa [#allocation7], 0
    %s11 = scalar_lea.sflag [#allocation7], 1
    %12 = vsyncpa %s11, 0
    %13 = vsyncpa [#allocation5], 0
    %s14 = scalar_lea.sflag [#allocation5], 1
    %15 = vsyncpa %s14, 0
    loop: start=0, step=1, limit=6
    $region2: #{tpu_custom_call.1} parent=1 // loop_pre_header
      _
    $region3: #{tpu_custom_call.1} parent=1 // loop_header
      %s17 = sphi 0, %s21
      %p18 = scmp.ge.s32.totalorder %s17, 6
      %s24 = sphi 0, %s43
      %s25 = sphi 0, %s39
      %s26 = sphi 0, %s35
      %s27 = sphi 0, %s24
      %s28 = sphi 0, %s25
      %s29 = sphi 0, %s26
      %s30 = sphi 0, %s27
      %s31 = sphi 0, %s28
      %s32 = sphi 0, %s29
      %s50 = sphi 0, %s52
      %s53 = sphi 0, %s50
      %s54 = sphi 0, %s53
      %s70 = sphi 0, %s54
      %s80 = sphi 0, %s82
      %s83 = sphi 0, %s80
      %s84 = sphi 0, %s83
      %s100 = sphi 0, %s84
      %s108 = sphi 0, %s110
      %s111 = sphi 0, %s108
      %s112 = sphi 0, %s111
      %s128 = sphi 0, %s112
    $region4: #{tpu_custom_call.1} parent=1 // loop_header_branch
      %20 = sbr.rel (%p18) target = $region8
    $region5: #{tpu_custom_call.1} parent=1 // loop_body
      %s22 = ssub.s32 %s17, 1
      %s23 = ssub.s32 %s17, 2
      %s33 = sadd.s32 1, %s26
      %p34 = scmp.ge.s32.totalorder %s33, 1
      %s35 = scalar_select %p34, 0, %s33
      %s36 = sadd.s32 1, %s25
      %s37 = scalar_select %p34, %s36, %s25
      %p38 = scmp.ge.s32.totalorder %s37, 2
      %s39 = scalar_select %p38, 0, %s37
      %s40 = sadd.s32 1, %s24
      %s41 = scalar_select %p38, %s40, %s24
      %p42 = scmp.ge.s32.totalorder %s41, 2
      %s43 = scalar_select %p42, 0, %s41
      %s44 = sadd.s32 %s25, %s26
      %s45 = sadd.s32 %s39, %s35
      %s46 = ssub.s32 %s24, %s43
      %s47 = ssub.s32 %s44, %s45
      %s48 = sor.u32 %s46, %s47
      %p49 = scmp.eq.s32.totalorder %s48, 0
      %s51 = sadd.s32 %s50, 1
      %s52 = scalar_select %p49, %s50, %s51
      %p55 = pneg %p49
      %p56 = scmp.eq.s32.totalorder %s17, 3
      %p57 = por %p55, %p56
      %p58 = scmp.ne.s32.totalorder %s50, %s53
      %p59 = scmp.eq.s32.totalorder %s17, 0
      %p60 = por %p58, %p59
      %p61 = scmp.ne.s32.totalorder %s50, %s53
      %p62 = scmp.eq.s32.totalorder %s22, 3
      %p63 = por %p61, %p62
      %p64 = scmp.ne.s32.totalorder %s53, %s54
      %p65 = scmp.eq.s32.totalorder %s22, 0
      %p66 = por %p64, %p65
      %p67 = scmp.ne.s32.totalorder %s53, %s54
      %p68 = scmp.eq.s32.totalorder %s23, 3
      %p69 = por %p67, %p68
      %p71 = scmp.ne.s32.totalorder %s54, %s70
      %p72 = scmp.eq.s32.totalorder %s23, 0
      %p73 = por %p71, %p72
      %s74 = sadd.s32 %s25, %s26
      %s75 = sadd.s32 %s39, %s35
      %s76 = ssub.s32 %s24, %s43
      %s77 = ssub.s32 %s74, %s75
      %s78 = sor.u32 %s76, %s77
      %p79 = scmp.eq.s32.totalorder %s78, 0
      %s81 = sadd.s32 %s80, 1
      %s82 = scalar_select %p79, %s80, %s81
      %p85 = pneg %p79
      %p86 = scmp.eq.s32.totalorder %s17, 3
      %p87 = por %p85, %p86
      %p88 = scmp.ne.s32.totalorder %s80, %s83
      %p89 = scmp.eq.s32.totalorder %s17, 0
      %p90 = por %p88, %p89
      %p91 = scmp.ne.s32.totalorder %s80, %s83
      %p92 = scmp.eq.s32.totalorder %s22, 3
      %p93 = por %p91, %p92
      %p94 = scmp.ne.s32.totalorder %s83, %s84
      %p95 = scmp.eq.s32.totalorder %s22, 0
      %p96 = por %p94, %p95
      %p97 = scmp.ne.s32.totalorder %s83, %s84
      %p98 = scmp.eq.s32.totalorder %s23, 3
      %p99 = por %p97, %p98
      %p101 = scmp.ne.s32.totalorder %s84, %s100
      %p102 = scmp.eq.s32.totalorder %s23, 0
      %p103 = por %p101, %p102
      %s104 = ssub.s32 %s24, %s43
      %s105 = ssub.s32 %s25, %s39
      %s106 = sor.u32 %s104, %s105
      %p107 = scmp.eq.s32.totalorder %s106, 0
      %s109 = sadd.s32 %s108, 1
      %s110 = scalar_select %p107, %s108, %s109
      %p113 = pneg %p107
      %p114 = scmp.eq.s32.totalorder %s17, 3
      %p115 = por %p113, %p114
      %p116 = scmp.ne.s32.totalorder %s108, %s111
      %p117 = scmp.eq.s32.totalorder %s17, 0
      %p118 = por %p116, %p117
      %p119 = scmp.ne.s32.totalorder %s108, %s111
      %p120 = scmp.eq.s32.totalorder %s22, 3
      %p121 = por %p119, %p120
      %p122 = scmp.ne.s32.totalorder %s111, %s112
      %p123 = scmp.eq.s32.totalorder %s22, 0
      %p124 = por %p122, %p123
      %p125 = scmp.ne.s32.totalorder %s111, %s112
      %p126 = scmp.eq.s32.totalorder %s23, 3
      %p127 = por %p125, %p126
      %p129 = scmp.ne.s32.totalorder %s112, %s128
      %p130 = scmp.eq.s32.totalorder %s23, 0
      %p131 = por %p129, %p130
      %p132 = scmp.le.s32.totalorder 1, %s17
      %p133 = scmp.lt.s32.totalorder %s17, 5
      %p134 = pnand %p132, %p133
      %p135 = pneg %p134
      // Predicated region
      $region9: #{tpu_custom_call.1} parent=5 // pred_check
        _
      $region10: #{tpu_custom_call.1} parent=5 // pred_check_branch
        %137 = sbr.rel (%p134) target = $region12
      $region11: #{tpu_custom_call.1} parent=5 // pred_region
        %s138 = ssub.s32 %s17, 1
      $region12: #{tpu_custom_call.1} parent=5 // pred_fallthru
        _
      %p139 = scmp.lt.s32.totalorder %s17, 4
      // Predicated region
      $region13: #{tpu_custom_call.1} parent=5 // pred_check
        %p140 = pneg %p139
      $region14: #{tpu_custom_call.1} parent=5 // pred_check_branch
        %142 = sbr.rel (%p140) target = $region16
      $region15: #{tpu_custom_call.1} parent=5 // pred_region
        // Predicated region
        $region17: #{tpu_custom_call.1} parent=15 // pred_check
          %p143 = pneg %p60
        $region18: #{tpu_custom_call.1} parent=15 // pred_check_branch
          %145 = sbr.rel (%p143) target = $region20
        $region19: #{tpu_custom_call.1} parent=15 // pred_region
          %s146 = sand.u32 %s50, 1
          %s147 = scalar_lea.sflag [#allocation4], %s146
          %s148 = sand.u32 %s50, 1
          %s149 = smul.addr %s148, 4
          %s150 = scalar_lea.vmem [#allocation3], %s149
          %s151 = sadd.s32 %s25, %s26
          %153 = vsyncadd %s147, 0
          %s154 = smul.addr %s24, 2
          %s155 = sadd.s32 %s151, %s154
          %s156 = smul.addr %s155, 4
          %s157 = scalar_lea.hbm %s0, %s156
          %s159 = sshll.u32 %s157, 4
          %s160 = int_to_ptr.hbm [resolvable:$true] %s159
          %s161 = sshll.u32 %s150, 4
          %s162 = int_to_ptr.vmem [resolvable:$true] %s161
          %164 = dma.hbm_to_vmem [thread:$0]  %s160, 64, %s162, %s147
        $region20: #{tpu_custom_call.1} parent=15 // pred_fallthru
          _
        // Predicated region
        $region21: #{tpu_custom_call.1} parent=15 // pred_check
          %p165 = pneg %p90
        $region22: #{tpu_custom_call.1} parent=15 // pred_check_branch
          %167 = sbr.rel (%p165) target = $region24
        $region23: #{tpu_custom_call.1} parent=15 // pred_region
          %s168 = sand.u32 %s80, 1
          %s169 = scalar_lea.sflag [#allocation7], %s168
          %s170 = sand.u32 %s80, 1
          %s171 = scalar_lea.vmem [#allocation6], %s170
          %s172 = sadd.s32 %s25, %s26
          %174 = vsyncadd %s169, 0
          %s175 = smul.addr %s24, 2
          %s176 = sadd.s32 %s172, %s175
          %s177 = scalar_lea.hbm %s1, %s176
          %s179 = sshll.u32 %s177, 4
          %s180 = int_to_ptr.hbm [resolvable:$true] %s179
          %s181 = sshll.u32 %s171, 4
          %s182 = int_to_ptr.vmem [resolvable:$true] %s181
          %184 = dma.hbm_to_vmem [thread:$0]  %s180, 16, %s182, %s169
        $region24: #{tpu_custom_call.1} parent=15 // pred_fallthru
          _
      $region16: #{tpu_custom_call.1} parent=5 // pred_fallthru
        _
      %p185 = scmp.le.s32.totalorder 1, %s17
      %p186 = scmp.lt.s32.totalorder %s17, 5
      %p187 = pnand %p185, %p186
      %p188 = pneg %p187
      // Predicated region
      $region25: #{tpu_custom_call.1} parent=5 // pred_check
        _
      $region26: #{tpu_custom_call.1} parent=5 // pred_check_branch
        %190 = sbr.rel (%p187) target = $region28
      $region27: #{tpu_custom_call.1} parent=5 // pred_region
        %s191 = ssub.s32 %s17, 1
        %s192 = sand.u32 %s53, 1
        %s193 = scalar_lea.sflag [#allocation4], %s192
        %s194 = sand.u32 %s53, 1
        %s195 = smul.addr %s194, 4
        %s196 = scalar_lea.vmem [#allocation3], %s195
        // Predicated region
        $region29: #{tpu_custom_call.1} parent=27 // pred_check
          %p197 = pneg %p66
        $region30: #{tpu_custom_call.1} parent=27 // pred_check_branch
          %199 = sbr.rel (%p197) target = $region32
        $region31: #{tpu_custom_call.1} parent=27 // pred_region
          %201 = dma.done %s193, 64
        $region32: #{tpu_custom_call.1} parent=27 // pred_fallthru
          _
        %s202 = sand.u32 %s83, 1
        %s203 = scalar_lea.sflag [#allocation7], %s202
        %s204 = sand.u32 %s83, 1
        %s205 = scalar_lea.vmem [#allocation6], %s204
        // Predicated region
        $region33: #{tpu_custom_call.1} parent=27 // pred_check
          %p206 = pneg %p96
        $region34: #{tpu_custom_call.1} parent=27 // pred_check_branch
          %208 = sbr.rel (%p206) target = $region36
        $region35: #{tpu_custom_call.1} parent=27 // pred_region
          %210 = dma.done %s203, 16
        $region36: #{tpu_custom_call.1} parent=27 // pred_fallthru
          _
        %s211 = sand.u32 %s53, 1
        %s212 = scalar_lea.sflag [#allocation4], %s211
        %s213 = sand.u32 %s53, 1
        %s214 = smul.addr %s213, 4
        %s215 = scalar_lea.vmem [#allocation3], %s214
        %p216 = pneg %p66
        %p217 = pneg %p63
        %s218 = sand.u32 %s83, 1
        %s219 = scalar_lea.sflag [#allocation7], %s218
        %s220 = sand.u32 %s83, 1
        %s221 = scalar_lea.vmem [#allocation6], %s220
        %p222 = pneg %p96
        %p223 = pneg %p93
        %p224 = pneg %p124
        %p225 = pneg %p121
        %s226 = sand.u32 %s111, 1
        %s227 = scalar_lea.sflag [#allocation5], %s226
        %s228 = sand.u32 %s111, 1
        %s229 = smul.addr %s228, 8
        %s230 = scalar_lea.vmem [#allocation8], %s229
        %s231 = sadd.s32 %s28, %s29
        %s232 = sadd.s32 %s28, %s29
        %p233 = scmp.eq.s32.totalorder %s29, 0
        // Predicated region
        $region37: #{tpu_custom_call.1} parent=27 // pred_check
          %p234 = pneg %p233
        $region38: #{tpu_custom_call.1} parent=27 // pred_check_branch
          %236 = sbr.rel (%p234) target = $region40
        $region39: #{tpu_custom_call.1} parent=27 // pred_region
          %237 = vst [vmem:[#allocation2] sm:$0xff] 0.0
        $region40: #{tpu_custom_call.1} parent=27 // pred_fallthru
          _
        %v238 = vld [vmem:[%s196] sm:$0xf]
        %v239 = vld [vmem:[%s205] sm:$0x1]
        %vm240 = vcmask 1043456
        %v241 = vsel %vm240, %v238, -inf
        %v242 = vrot.slane %v241, 4
        %v243 = vmax.f32 %v241, %v242
        %v244 = vrot.slane %v243, 2
        %v245 = vmax.f32 %v243, %v244
        %v246 = vrot.slane %v245, 1
        %v247 = vmax.f32 %v245, %v246
        %v248 = vsub.f32 %v238, %v247
        %v249 = vmul.f32 %v248, 1.442695
        %v250 = vpow.pop %v249
        %v251 = vsel %vm240, %v250, 0.0
        %v252 = vrot.slane %v251, 4
        %v253 = vadd.f32 %v251, %v252
        %v254 = vrot.slane %v253, 2
        %v255 = vadd.f32 %v253, %v254
        %v256 = vrot.slane %v255, 1
        %v257 = vadd.f32 %v255, %v256
        %v258 = vrcp.pop %v257
        %v259 = vmul.f32 %v257, %v258
        %v260 = vsub.f32 1.0, %v259
        %v261 = vmul.f32 %v258, %v260
        %v262 = vadd.f32 %v258, %v261
        %vm263 = vweird.f32 %v257
        %vm264 = vweird.f32 %v258
        %vm265 = vmor %vm263, %vm264
        %v266 = vsel %vm265, %v258, %v262
        %v267 = vand.u32 2147483647, %v257
        %vm268 = vcmp.eq.f32.partialorder %v267, 8.507059e+37
        %v269 = vand.u32 %v257, 2147483648
        %v270 = vor.u32 1.1754944e-38, %v269
        %v271 = vsel %vm268, %v270, %v266
        %v272 = vmul.f32 1.0, %v271
        %v273 = vmul.f32 %v250, %v272
        %v274 = vlaneseq
        %v275 = vshrl.u32 %v274, 7
        %v276 = vperm.slane %v239, 0
        %vm277 = vcmp.eq.s32.totalorder %v275, %v276
        %v278 = vsel %vm277, 1, 0
        %v279 = vcvt.s32.f32 %v278
        %vm280 = vcmp.ge.s32.totalorder %v239, 0
        %v281 = vsel %vm280, 1, 0
        %v282 = vcvt.s32.f32 %v281
        %v283 = vmul.f32 %v279, %v248
        %v284 = vsel %vm240, %v283, 0.0
        %v285 = vrot.slane %v284, 4
        %v286 = vadd.f32 %v284, %v285
        %v287 = vrot.slane %v286, 2
        %v288 = vadd.f32 %v286, %v287
        %v289 = vrot.slane %v288, 1
        %v290 = vadd.f32 %v288, %v289
        %v291 = vlog2.pop %v257
        %v292 = vmul.f32 %v291, 0.6931472
        %v293 = vsub.f32 %v292, %v290
        %v294 = vmul.f32 %v279, %v273
        %v295 = vsel %vm240, %v294, 0.0
        %296 = vadd.xlane.f32.xlu0 %v295
        %v297 = vpop.xlane.xlu0 %296
        %v299 = vperm.slane %v282, 0
        %v301 = vmul.f32 %v273, %v299
        %v302 = vsel %vm240, %v301, 0.0
        %303 = vadd.xlane.f32.xlu0 %v302
        %v304 = vpop.xlane.xlu0 %303
        %v305 = vsel %vm240, %v279, 0.0
        %306 = vadd.xlane.f32.xlu0 %v305
        %v307 = vpop.xlane.xlu0 %306
        %v308 = vmul.f32 %v279, %v293
        %v309 = vsel %vm240, %v308, 0.0
        %310 = vadd.xlane.f32.xlu0 %v309
        %v311 = vpop.xlane.xlu0 %310
        %v312 = vld [vmem:[#allocation2] sm:$0xf]
        %v313 = vadd.f32 %v312, %v297
        %vm314 = vcmask 3072
        %315 = vst.msk [vmem:[#allocation2] sm:$0xf] %vm314, %v313
        %v316 = vld [vmem:[#allocation2] sm:$0xf]
        %v317 = vadd.f32 %v316, %v304
        %vm318 = vcmask 11272
        %319 = vst.msk [vmem:[#allocation2] sm:$0xf] %vm318, %v317
        %v320 = vld [vmem:[#allocation2] sm:$0xf]
        %v321 = vadd.f32 %v320, %v307
        %vm322 = vcmask 19472
        %323 = vst.msk [vmem:[#allocation2] sm:$0xf] %vm322, %v321
        %v324 = vld [vmem:[#allocation2] sm:$0xf]
        %v325 = vadd.f32 %v324, %v311
        %vm326 = vcmask 27672
        %327 = vst.msk [vmem:[#allocation2] sm:$0xf] %vm326, %v325
        // Predicated region
        $region41: #{tpu_custom_call.1} parent=27 // pred_check
          %p328 = pneg %p233
        $region42: #{tpu_custom_call.1} parent=27 // pred_check_branch
          %330 = sbr.rel (%p328) target = $region44
        $region43: #{tpu_custom_call.1} parent=27 // pred_region
          %v331 = vld [vmem:[#allocation2] sm:$0xff]
          %332 = vst [vmem:[%s230] sm:$0xff] %v331
        $region44: #{tpu_custom_call.1} parent=27 // pred_fallthru
          _
        %s333 = sand.u32 %s111, 1
        %s334 = scalar_lea.sflag [#allocation5], %s333
        %s335 = sand.u32 %s111, 1
        %s336 = smul.addr %s335, 8
        %s337 = scalar_lea.vmem [#allocation8], %s336
        // Predicated region
        $region45: #{tpu_custom_call.1} parent=27 // pred_check
          %p338 = pneg %p121
        $region46: #{tpu_custom_call.1} parent=27 // pred_check_branch
          %340 = sbr.rel (%p338) target = $region48
        $region47: #{tpu_custom_call.1} parent=27 // pred_region
          %342 = vsyncadd %s334, 0
          %s343 = smul.addr %s27, 2
          %s344 = sadd.s32 %s28, %s343
          %s345 = smul.addr %s344, 8
          %s346 = scalar_lea.hbm %s2, %s345
          %s348 = sshll.u32 %s337, 4
          %s349 = int_to_ptr.vmem [resolvable:$true] %s348
          %s350 = sshll.u32 %s346, 4
          %s351 = int_to_ptr.hbm [resolvable:$true] %s350
          %353 = dma.vmem_to_hbm [thread:$0]  %s349, 128, %s351, %s334
        $region48: #{tpu_custom_call.1} parent=27 // pred_fallthru
          _
      $region28: #{tpu_custom_call.1} parent=5 // pred_fallthru
        _
      %p354 = scmp.le.s32.totalorder 2, %s17
      // Predicated region
      $region49: #{tpu_custom_call.1} parent=5 // pred_check
        %p355 = pneg %p354
      $region50: #{tpu_custom_call.1} parent=5 // pred_check_branch
        %357 = sbr.rel (%p355) target = $region52
      $region51: #{tpu_custom_call.1} parent=5 // pred_region
        %s358 = ssub.s32 %s17, 2
        // Predicated region
        $region53: #{tpu_custom_call.1} parent=51 // pred_check
          %p359 = pneg %p127
        $region54: #{tpu_custom_call.1} parent=51 // pred_check_branch
          %361 = sbr.rel (%p359) target = $region56
        $region55: #{tpu_custom_call.1} parent=51 // pred_region
          %s362 = sand.u32 %s112, 1
          %s363 = scalar_lea.sflag [#allocation5], %s362
          %s364 = sand.u32 %s112, 1
          %s365 = smul.addr %s364, 8
          %s366 = scalar_lea.vmem [#allocation8], %s365
          %368 = dma.done %s363, 128
        $region56: #{tpu_custom_call.1} parent=51 // pred_fallthru
          _
      $region52: #{tpu_custom_call.1} parent=5 // pred_fallthru
        _
    $region6: #{tpu_custom_call.1} parent=1 // loop_footer
      %s21 = sadd.s32 1, %s17
    $region7: #{tpu_custom_call.1} parent=1 // loop_footer_branch
      %16 = sbr.rel target = $region3
    $region8: #{tpu_custom_call.1} parent=1 // loop_exit
      _
    %369 = vsyncpa [#allocation4], 1
    %s370 = scalar_lea.sflag [#allocation4], 1
    %371 = vsyncpa %s370, 1
    %372 = vsyncpa [#allocation7], 1
    %s373 = scalar_lea.sflag [#allocation7], 1
    %374 = vsyncpa %s373, 1
    %375 = vsyncpa [#allocation5], 1
    %s376 = scalar_lea.sflag [#allocation5], 1
    %377 = vsyncpa %s376, 1

</llo_original>
